<compile_context>
chip_gen: v5e
topology: v5e:2x2
jax: 0.10.0
libtpu: 0.0.40
codegen_flags: <defaults>
</compile_context>

<pallas_src>
import math

import jax
import jax.numpy as jnp
from jax import lax
from jax.experimental import pallas as pl
from jax.experimental.pallas import tpu as pltpu

# ---------------- config (small synthetic shapes) ----------------
VOCAB = 50
B = 2            # batch
S = 8            # sequence length
BS = B * S       # flattened rows
H = 32           # embedding_dim (hidden)
NH = 2           # attention heads
DH = H // NH     # head dim
FFN = 64         # intermediate size
C = 4            # num_classes
CPAD = 128       # lane-dense padded class dim
DROPOUT_P = 0.1
LN_EPS = 1e-12

# packed weight-slab lane offsets: [wqkv | wo | w1 | wp | wf_pad]
OFF_QKV = 0
OFF_WO = OFF_QKV + 3 * H          # 96
OFF_W1 = OFF_WO + H               # 128
OFF_WP = OFF_W1 + FFN             # 192
OFF_WF = OFF_WP + H               # 224
W_TOTAL = OFF_WF + CPAD           # 352
WSLAB = 384                       # padded to a lane multiple

VEC_ROWS = 16                     # vector slab (VEC_ROWS, 128)


# ---------------- shared math helpers (usable in & out of kernels) -----------
def _layernorm(x, g, b):
    mu = jnp.mean(x, axis=-1, keepdims=True)
    var = jnp.mean((x - mu) ** 2, axis=-1, keepdims=True)
    return (x - mu) * lax.rsqrt(var + LN_EPS) * g + b


def _gelu_tanh(x):
    # TODO(synk): HF BERT uses exact erf-based GELU; tanh approximation used
    # here (EUP-friendly) and mirrored exactly in the reference.
    c = math.sqrt(2.0 / math.pi)
    return 0.5 * x * (1.0 + jnp.tanh(c * (x + 0.044715 * x * x * x)))


# ---------------- fused Pallas kernel ----------------
def fused_bert_kernel(x_ref, bias_ref, drop_ref, wslab_ref, w2_ref, vec_ref,
                      out_ref, ctx_ref):
    """Embeddings-LN -> 1 encoder layer -> pooler -> dropout -> classifier.

    All B*S rows are processed in one shot; cross-batch attention is disabled
    by the precomputed additive bias (block-diagonal + key padding mask).
    """
    # ---- unpack vector slab (static row/lane slices) ----
    bqkv = vec_ref[0:1, 0:3 * H]          # (1, 3H)  (Q part pre-scaled)
    b1 = vec_ref[1:2, 0:FFN]              # (1, FFN)
    bf = vec_ref[2:3, :]                  # (1, CPAD)
    lne_g = vec_ref[3:4, 0:H]
    lne_b = vec_ref[4:5, 0:H]
    ln1_g = vec_ref[5:6, 0:H]
    ln1_b = vec_ref[6:7, 0:H]
    ln2_g = vec_ref[7:8, 0:H]
    ln2_b = vec_ref[8:9, 0:H]
    bo = vec_ref[9:10, 0:H]
    b2 = vec_ref[10:11, 0:H]
    bp = vec_ref[11:12, 0:H]

    # ---- unpack weight slab (static lane slices) ----
    wqkv = wslab_ref[:, OFF_QKV:OFF_WO]   # (H, 3H)
    wo = wslab_ref[:, OFF_WO:OFF_W1]      # (H, H)
    w1 = wslab_ref[:, OFF_W1:OFF_WP]      # (H, FFN)
    wp = wslab_ref[:, OFF_WP:OFF_WF]      # (H, H)
    wf = wslab_ref[:, OFF_WF:OFF_WF + CPAD]  # (H, CPAD)

    # embedding layernorm
    x = _layernorm(x_ref[...], lne_g, lne_b)        # (BS, H)

    # fused QKV projection: one matmul for all heads / all rows.
    # 1/sqrt(DH) is already folded into the Q columns of wqkv (and into bq).
    qkv = jnp.dot(x, wqkv, preferred_element_type=jnp.float32) + bqkv   # (BS, 3H)
    q = qkv[:, 0:H]
    k = qkv[:, H:2 * H]
    v = qkv[:, 2 * H:3 * H]

    bias = bias_ref[...]                            # (BS, BS) additive mask

    # per-head attention; contexts written straight into a VMEM scratch at
    # their lane offsets (no lane concatenation on the critical path)
    for h in range(NH):                             # static head loop (NH=2)
        sl = slice(h * DH, (h + 1) * DH)
        qh, kh, vh = q[:, sl], k[:, sl], v[:, sl]
        # contract the head dim directly (no explicit transpose of K)
        s = lax.dot_general(qh, kh, (((1,), (1,)), ((), ())),
                            preferred_element_type=jnp.float32) + bias
        m = jnp.max(s, axis=-1, keepdims=True)
        e = jnp.exp(s - m)
        p = e * pl.reciprocal(jnp.sum(e, axis=-1, keepdims=True), approx=True)
        ctx_ref[:, sl] = jnp.dot(p, vh, preferred_element_type=jnp.float32)
    ctx = ctx_ref[...]                              # (BS, H)

    attn = jnp.dot(ctx, wo, preferred_element_type=jnp.float32) + bo
    x = _layernorm(x + attn, ln1_g, ln1_b)

    hmid = _gelu_tanh(jnp.dot(x, w1, preferred_element_type=jnp.float32) + b1)
    ffn = jnp.dot(hmid, w2_ref[...], preferred_element_type=jnp.float32) + b2
    x = _layernorm(x + ffn, ln2_g, ln2_b)           # (BS, H)

    # pooler: select CLS rows (0, S, 2S, ...) via a one-hot matmul on the MXU
    # (keeps the XLU free; no sublane gather/concat).
    rows = lax.broadcasted_iota(jnp.int32, (B, BS), 0)
    cols = lax.broadcasted_iota(jnp.int32, (B, BS), 1)
    sel = (cols == rows * S).astype(jnp.float32)    # (B, BS) one-hot
    cls = jnp.dot(sel, x, preferred_element_type=jnp.float32)      # (B, H)
    pooled = jnp.tanh(jnp.dot(cls, wp, preferred_element_type=jnp.float32) + bp)

    # dropout: pre-scaled keep mask generated host-side (ones in eval mode)
    pooled = pooled * drop_ref[...]

    # classifier head; weights/bias padded to 128 lanes -> lane-dense store
    out_ref[...] = jnp.dot(pooled, wf, preferred_element_type=jnp.float32) + bf


# ---------------- wrapper (glue + pallas_call) ----------------
def _full_spec(shape):
    nd = len(shape)
    return pl.BlockSpec(shape, lambda i, _nd=nd: (0,) * _nd)


def _attention_bias(masks):
    """(BS, BS) additive bias: block-diagonal over batch + key padding mask."""
    batch_idx = jnp.arange(BS) // S
    same_batch = batch_idx[:, None] == batch_idx[None, :]
    key_ok = masks.reshape(BS).astype(bool)[None, :]
    return jnp.where(same_batch & key_ok, 0.0, -1e9).astype(jnp.float32)


def pack_params(p):
    """One-time weight packing (hoisted out of the per-call path)."""
    scale = 1.0 / math.sqrt(DH)
    # fold attention scale into Q projection (weights + bias)
    w_qkv = jnp.concatenate([p["wq"] * scale, p["wk"], p["wv"]], axis=1)  # (H,3H)
    b_qkv = jnp.concatenate([p["bq"] * scale, p["bk"], p["bv"]], axis=1)  # (1,3H)

    w_slab = jnp.zeros((H, WSLAB), jnp.float32)
    w_slab = w_slab.at[:, OFF_QKV:OFF_WO].set(w_qkv)
    w_slab = w_slab.at[:, OFF_WO:OFF_W1].set(p["wo"])
    w_slab = w_slab.at[:, OFF_W1:OFF_WP].set(p["w1"])
    w_slab = w_slab.at[:, OFF_WP:OFF_WF].set(p["wp"])
    w_slab = w_slab.at[:, OFF_WF:OFF_WF + C].set(p["wf"])

    vec = jnp.zeros((VEC_ROWS, 128), jnp.float32)
    vec = vec.at[0, 0:3 * H].set(b_qkv[0])
    vec = vec.at[1, 0:FFN].set(p["b1"][0])
    vec = vec.at[2, 0:C].set(p["bf"][0])
    for r, name in enumerate(["lne_g", "lne_b", "ln1_g", "ln1_b",
                              "ln2_g", "ln2_b", "bo", "b2", "bp"]):
        vec = vec.at[3 + r, 0:H].set(p[name][0])

    return {"word_emb": p["word_emb"], "pos_emb": p["pos_emb"],
            "w_slab": w_slab, "w2": p["w2"], "vec": vec}


@jax.jit
def finetuned_bert_forward(ids, masks, packed, drop_mask):
    """drop_mask: (B, H) pre-scaled keep mask (ones => eval / identity)."""
    # glue: embedding lookup (word + position), flattened to (B*S, H)
    x = (jnp.take(packed["word_emb"], ids, axis=0)
         + packed["pos_emb"][None]).reshape(BS, H).astype(jnp.float32)
    bias = _attention_bias(masks)

    inputs = [x, bias, drop_mask, packed["w_slab"], packed["w2"], packed["vec"]]
    in_specs = [_full_spec(a.shape) for a in inputs]

    out = pl.pallas_call(
        fused_bert_kernel,
        out_shape=jax.ShapeDtypeStruct((B, CPAD), jnp.float32),
        grid=(1,),
        in_specs=in_specs,
        out_specs=_full_spec((B, CPAD)),
        scratch_shapes=[pltpu.VMEM((BS, H), jnp.float32)],   # per-head ctx slab
        compiler_params=pltpu.CompilerParams(
            dimension_semantics=("arbitrary",)),
    )(*inputs)
    return out[:, :C]


# ---------------- deterministic parameter init ----------------
def init_params(key):
    ks = jax.random.split(key, 10)

    def nrm(k, shape):
        return (0.02 * jax.random.normal(k, shape)).astype(jnp.float32)

    ones_h = jnp.ones((1, H), jnp.float32)
    zeros_h = jnp.zeros((1, H), jnp.float32)
    return {
        "word_emb": nrm(ks[0], (VOCAB, H)),
        "pos_emb": nrm(ks[1], (S, H)),
        "lne_g": ones_h, "lne_b": zeros_h,
        "wq": nrm(ks[2], (H, H)), "bq": zeros_h,
        "wk": nrm(ks[3], (H, H)), "bk": zeros_h,
        "wv": nrm(ks[4], (H, H)), "bv": zeros_h,
        "wo": nrm(ks[5], (H, H)), "bo": zeros_h,
        "ln1_g": ones_h, "ln1_b": zeros_h,
        "w1": nrm(ks[6], (H, FFN)), "b1": jnp.zeros((1, FFN), jnp.float32),
        "w2": nrm(ks[7], (FFN, H)), "b2": zeros_h,
        "ln2_g": ones_h, "ln2_b": zeros_h,
        "wp": nrm(ks[8], (H, H)), "bp": zeros_h,
        "wf": nrm(ks[9], (H, C)), "bf": jnp.zeros((1, C), jnp.float32),
    }


# ---------------- pure-JAX reference (eval mode, no dropout) ----------------
def reference_forward(ids, masks, p):
    hp = lax.Precision.HIGHEST
    x = (jnp.take(p["word_emb"], ids, axis=0) + p["pos_emb"][None]).reshape(BS, H)
    x = _layernorm(x, p["lne_g"], p["lne_b"])
    bias = _attention_bias(masks)

    q = jnp.dot(x, p["wq"], precision=hp) + p["bq"]
    k = jnp.dot(x, p["wk"], precision=hp) + p["bk"]
    v = jnp.dot(x, p["wv"], precision=hp) + p["bv"]

    scale = 1.0 / math.sqrt(DH)
    parts = []
    for h in range(NH):
        sl = slice(h * DH, (h + 1) * DH)
        s = jnp.dot(q[:, sl], k[:, sl].T, precision=hp) * scale + bias
        pr = jax.nn.softmax(s, axis=-1)
        parts.append(jnp.dot(pr, v[:, sl], precision=hp))
    ctx = jnp.concatenate(parts, axis=-1)
    attn = jnp.dot(ctx, p["wo"], precision=hp) + p["bo"]
    x = _layernorm(x + attn, p["ln1_g"], p["ln1_b"])

    hmid = _gelu_tanh(jnp.dot(x, p["w1"], precision=hp) + p["b1"])
    ffn = jnp.dot(hmid, p["w2"], precision=hp) + p["b2"]
    x = _layernorm(x + ffn, p["ln2_g"], p["ln2_b"])

    cls = x[0::S]                                    # (B, H)
    pooled = jnp.tanh(jnp.dot(cls, p["wp"], precision=hp) + p["bp"])
    return jnp.dot(pooled, p["wf"], precision=hp) + p["bf"]


# ---------------- main ----------------
if __name__ == "__main__":
    key = jax.random.PRNGKey(0)
    params = init_params(key)
    packed = pack_params(params)     # done once, reused across calls

    ids = jax.random.randint(jax.random.PRNGKey(1), (B, S), 0, VOCAB, dtype=jnp.int32)
    masks = jnp.array([[1, 1, 1, 1, 1, 1, 1, 1],
                       [1, 1, 1, 1, 1, 0, 0, 0]], dtype=jnp.int32)

    # eval-mode check (dropout is identity) against pure-JAX reference
    ones_mask = jnp.ones((B, H), jnp.float32)
    logits_eval = finetuned_bert_forward(ids, masks, packed, ones_mask)
    ref = reference_forward(ids, masks, params)
    max_diff = float(jnp.max(jnp.abs(logits_eval - ref)))
    # tolerance accounts for default MXU matmul precision vs HIGHEST reference
    assert max_diff < 5e-3, f"mismatch vs reference: {max_diff}"

    # training-mode forward (matches nn.Module default training=True):
    # dropout keep-mask is properly keyed per call (host-side jax.random),
    # applied inside the fused kernel.
    keep = jax.random.bernoulli(jax.random.PRNGKey(2), 1.0 - DROPOUT_P, (B, H))
    drop_mask = keep.astype(jnp.float32) / (1.0 - DROPOUT_P)
    logits_train = finetuned_bert_forward(ids, masks, packed, drop_mask)
    jax.block_until_ready(logits_train)

    print("KERNEL_OK")
</pallas_src>

<mosaic_0001>
module attributes {stable_mosaic.version = 11 : i64} {
  func.func @fused_bert_kernel(%arg0: i32, %arg1: memref<16x32xf32, #tpu.memory_space<vmem>>, %arg2: memref<16x16xf32, #tpu.memory_space<vmem>>, %arg3: memref<2x32xf32, #tpu.memory_space<vmem>>, %arg4: memref<32x384xf32, #tpu.memory_space<vmem>>, %arg5: memref<64x32xf32, #tpu.memory_space<vmem>>, %arg6: memref<16x128xf32, #tpu.memory_space<vmem>>, %arg7: memref<2x128xf32, #tpu.memory_space<vmem>>, %arg8: memref<16x32xf32, #tpu.memory_space<vmem>>) attributes {dimension_semantics = [#tpu.dimension_semantics<arbitrary>], iteration_bounds = array<i64: 1>, scalar_prefetch = 0 : i64, scratch_operands = 1 : i64, tpu.core_type = #tpu.core_type<tc>, window_params = [{pipeline_mode = #tpu.pipeline_mode<synchronous>, transform_indices = @transform_0, window_bounds = array<i64: 16, 32>}, {pipeline_mode = #tpu.pipeline_mode<synchronous>, transform_indices = @transform_1, window_bounds = array<i64: 16, 16>}, {pipeline_mode = #tpu.pipeline_mode<synchronous>, transform_indices = @transform_2, window_bounds = array<i64: 2, 32>}, {pipeline_mode = #tpu.pipeline_mode<synchronous>, transform_indices = @transform_3, window_bounds = array<i64: 32, 384>}, {pipeline_mode = #tpu.pipeline_mode<synchronous>, transform_indices = @transform_4, window_bounds = array<i64: 64, 32>}, {pipeline_mode = #tpu.pipeline_mode<synchronous>, transform_indices = @transform_5, window_bounds = array<i64: 16, 128>}, {pipeline_mode = #tpu.pipeline_mode<synchronous>, transform_indices = @transform_6, window_bounds = array<i64: 2, 128>}]} {
    %c0 = arith.constant 0 : index
    %c0_0 = arith.constant 0 : index
    %0 = vector.load %arg6[%c0, %c0_0] : memref<16x128xf32, #tpu.memory_space<vmem>>, vector<1x96xf32>
    %c1 = arith.constant 1 : index
    %c0_1 = arith.constant 0 : index
    %1 = vector.load %arg6[%c1, %c0_1] : memref<16x128xf32, #tpu.memory_space<vmem>>, vector<1x64xf32>
    %c2 = arith.constant 2 : index
    %c0_2 = arith.constant 0 : index
    %2 = vector.load %arg6[%c2, %c0_2] : memref<16x128xf32, #tpu.memory_space<vmem>>, vector<1x128xf32>
    %c3 = arith.constant 3 : index
    %c0_3 = arith.constant 0 : index
    %3 = vector.load %arg6[%c3, %c0_3] : memref<16x128xf32, #tpu.memory_space<vmem>>, vector<1x32xf32>
    %c4 = arith.constant 4 : index
    %c0_4 = arith.constant 0 : index
    %4 = vector.load %arg6[%c4, %c0_4] : memref<16x128xf32, #tpu.memory_space<vmem>>, vector<1x32xf32>
    %c5 = arith.constant 5 : index
    %c0_5 = arith.constant 0 : index
    %5 = vector.load %arg6[%c5, %c0_5] : memref<16x128xf32, #tpu.memory_space<vmem>>, vector<1x32xf32>
    %c6 = arith.constant 6 : index
    %c0_6 = arith.constant 0 : index
    %6 = vector.load %arg6[%c6, %c0_6] : memref<16x128xf32, #tpu.memory_space<vmem>>, vector<1x32xf32>
    %c7 = arith.constant 7 : index
    %c0_7 = arith.constant 0 : index
    %7 = vector.load %arg6[%c7, %c0_7] : memref<16x128xf32, #tpu.memory_space<vmem>>, vector<1x32xf32>
    %c8 = arith.constant 8 : index
    %c0_8 = arith.constant 0 : index
    %8 = vector.load %arg6[%c8, %c0_8] : memref<16x128xf32, #tpu.memory_space<vmem>>, vector<1x32xf32>
    %c9 = arith.constant 9 : index
    %c0_9 = arith.constant 0 : index
    %9 = vector.load %arg6[%c9, %c0_9] : memref<16x128xf32, #tpu.memory_space<vmem>>, vector<1x32xf32>
    %c10 = arith.constant 10 : index
    %c0_10 = arith.constant 0 : index
    %10 = vector.load %arg6[%c10, %c0_10] : memref<16x128xf32, #tpu.memory_space<vmem>>, vector<1x32xf32>
    %c11 = arith.constant 11 : index
    %c0_11 = arith.constant 0 : index
    %11 = vector.load %arg6[%c11, %c0_11] : memref<16x128xf32, #tpu.memory_space<vmem>>, vector<1x32xf32>
    %c0_12 = arith.constant 0 : index
    %c0_13 = arith.constant 0 : index
    %12 = vector.load %arg4[%c0_12, %c0_13] : memref<32x384xf32, #tpu.memory_space<vmem>>, vector<32x96xf32>
    %c0_14 = arith.constant 0 : index
    %c96 = arith.constant 96 : index
    %13 = vector.load %arg4[%c0_14, %c96] : memref<32x384xf32, #tpu.memory_space<vmem>>, vector<32x32xf32>
    %c0_15 = arith.constant 0 : index
    %c128 = arith.constant 128 : index
    %14 = vector.load %arg4[%c0_15, %c128] : memref<32x384xf32, #tpu.memory_space<vmem>>, vector<32x64xf32>
    %c0_16 = arith.constant 0 : index
    %c192 = arith.constant 192 : index
    %15 = vector.load %arg4[%c0_16, %c192] : memref<32x384xf32, #tpu.memory_space<vmem>>, vector<32x32xf32>
    %c0_17 = arith.constant 0 : index
    %c224 = arith.constant 224 : index
    %16 = vector.load %arg4[%c0_17, %c224] : memref<32x384xf32, #tpu.memory_space<vmem>>, vector<32x128xf32>
    %c0_18 = arith.constant 0 : index
    %c0_19 = arith.constant 0 : index
    %17 = vector.load %arg1[%c0_18, %c0_19] : memref<16x32xf32, #tpu.memory_space<vmem>>, vector<16x32xf32>
    %cst = arith.constant dense<0.000000e+00> : vector<16xf32>
    %18 = vector.multi_reduction <add>, %17, %cst [1] : vector<16x32xf32> to vector<16xf32>
    %19 = vector.shape_cast %18 : vector<16xf32> to vector<16x1xf32>
    %cst_20 = arith.constant 3.200000e+01 : f32
    %20 = vector.broadcast %cst_20 : f32 to vector<16x1xf32>
    %21 = arith.divf %19, %20 : vector<16x1xf32>
    %22 = vector.broadcast %21 : vector<16x1xf32> to vector<16x32xf32>
    %23 = arith.subf %17, %22 : vector<16x32xf32>
    %24 = arith.mulf %23, %23 : vector<16x32xf32>
    %cst_21 = arith.constant dense<0.000000e+00> : vector<16xf32>
    %25 = vector.multi_reduction <add>, %24, %cst_21 [1] : vector<16x32xf32> to vector<16xf32>
    %26 = vector.shape_cast %25 : vector<16xf32> to vector<16x1xf32>
    %cst_22 = arith.constant 3.200000e+01 : f32
    %27 = vector.broadcast %cst_22 : f32 to vector<16x1xf32>
    %28 = arith.divf %26, %27 : vector<16x1xf32>
    %29 = vector.broadcast %21 : vector<16x1xf32> to vector<16x32xf32>
    %30 = arith.subf %17, %29 : vector<16x32xf32>
    %cst_23 = arith.constant 9.99999996E-13 : f32
    %31 = vector.broadcast %cst_23 : f32 to vector<16x1xf32>
    %32 = arith.addf %28, %31 : vector<16x1xf32>
    %33 = math.rsqrt %32 : vector<16x1xf32>
    %34 = vector.broadcast %33 : vector<16x1xf32> to vector<16x32xf32>
    %35 = arith.mulf %30, %34 : vector<16x32xf32>
    %36 = vector.broadcast %3 : vector<1x32xf32> to vector<16x32xf32>
    %37 = arith.mulf %35, %36 : vector<16x32xf32>
    %38 = vector.broadcast %4 : vector<1x32xf32> to vector<16x32xf32>
    %39 = arith.addf %37, %38 : vector<16x32xf32>
    %cst_24 = arith.constant dense<0.000000e+00> : vector<16x96xf32>
    %40 = tpu.matmul %39, %12, %cst_24 {dimension_numbers = #tpu.dot_dimension_numbers<[1], [0], [0], [1], [0, 0, 1, 1], [], []>} : vector<16x32xf32>, vector<32x96xf32>, vector<16x96xf32> -> vector<16x96xf32>
    %41 = vector.broadcast %0 : vector<1x96xf32> to vector<16x96xf32>
    %42 = arith.addf %40, %41 : vector<16x96xf32>
    %43 = vector.extract_strided_slice %42 {offsets = [0, 0], sizes = [16, 32], strides = [1, 1]} : vector<16x96xf32> to vector<16x32xf32>
    %44 = vector.extract_strided_slice %42 {offsets = [0, 32], sizes = [16, 32], strides = [1, 1]} : vector<16x96xf32> to vector<16x32xf32>
    %45 = vector.extract_strided_slice %42 {offsets = [0, 64], sizes = [16, 32], strides = [1, 1]} : vector<16x96xf32> to vector<16x32xf32>
    %c0_25 = arith.constant 0 : index
    %c0_26 = arith.constant 0 : index
    %46 = vector.load %arg2[%c0_25, %c0_26] : memref<16x16xf32, #tpu.memory_space<vmem>>, vector<16x16xf32>
    %47 = vector.extract_strided_slice %43 {offsets = [0, 0], sizes = [16, 16], strides = [1, 1]} : vector<16x32xf32> to vector<16x16xf32>
    %48 = vector.extract_strided_slice %44 {offsets = [0, 0], sizes = [16, 16], strides = [1, 1]} : vector<16x32xf32> to vector<16x16xf32>
    %49 = vector.extract_strided_slice %45 {offsets = [0, 0], sizes = [16, 16], strides = [1, 1]} : vector<16x32xf32> to vector<16x16xf32>
    %cst_27 = arith.constant dense<0.000000e+00> : vector<16x16xf32>
    %50 = tpu.matmul %47, %48, %cst_27 {dimension_numbers = #tpu.dot_dimension_numbers<[1], [1], [0], [0], [0, 0, 1, 0], [], []>} : vector<16x16xf32>, vector<16x16xf32>, vector<16x16xf32> -> vector<16x16xf32>
    %51 = arith.addf %50, %46 : vector<16x16xf32>
    %cst_28 = arith.constant dense<0xFF800000> : vector<16xf32>
    %52 = vector.multi_reduction <maximumf>, %51, %cst_28 [1] : vector<16x16xf32> to vector<16xf32>
    %53 = vector.shape_cast %52 : vector<16xf32> to vector<16x1xf32>
    %54 = vector.broadcast %53 : vector<16x1xf32> to vector<16x16xf32>
    %55 = arith.subf %51, %54 : vector<16x16xf32>
    %56 = math.exp %55 : vector<16x16xf32>
    %cst_29 = arith.constant dense<0.000000e+00> : vector<16xf32>
    %57 = vector.multi_reduction <add>, %56, %cst_29 [1] : vector<16x16xf32> to vector<16xf32>
    %58 = vector.shape_cast %57 : vector<16xf32> to vector<16x1xf32>
    %59 = tpu.reciprocal %58 {approx = true} : vector<16x1xf32> -> vector<16x1xf32>
    %60 = vector.broadcast %59 : vector<16x1xf32> to vector<16x16xf32>
    %61 = arith.mulf %56, %60 : vector<16x16xf32>
    %cst_30 = arith.constant dense<0.000000e+00> : vector<16x16xf32>
    %62 = tpu.matmul %61, %49, %cst_30 {dimension_numbers = #tpu.dot_dimension_numbers<[1], [0], [0], [1], [0, 0, 1, 1], [], []>} : vector<16x16xf32>, vector<16x16xf32>, vector<16x16xf32> -> vector<16x16xf32>
    %c0_31 = arith.constant 0 : index
    %c0_32 = arith.constant 0 : index
    %63 = vector.load %arg8[%c0_31, %c0_32] : memref<16x32xf32, #tpu.memory_space<vmem>>, vector<16x16xf32>
    tpu.vector_store %arg8[%c0_31, %c0_32], %62 {strides = array<i32>} : memref<16x32xf32, #tpu.memory_space<vmem>>, vector<16x16xf32>,
    %64 = vector.extract_strided_slice %43 {offsets = [0, 16], sizes = [16, 16], strides = [1, 1]} : vector<16x32xf32> to vector<16x16xf32>
    %65 = vector.extract_strided_slice %44 {offsets = [0, 16], sizes = [16, 16], strides = [1, 1]} : vector<16x32xf32> to vector<16x16xf32>
    %66 = vector.extract_strided_slice %45 {offsets = [0, 16], sizes = [16, 16], strides = [1, 1]} : vector<16x32xf32> to vector<16x16xf32>
    %cst_33 = arith.constant dense<0.000000e+00> : vector<16x16xf32>
    %67 = tpu.matmul %64, %65, %cst_33 {dimension_numbers = #tpu.dot_dimension_numbers<[1], [1], [0], [0], [0, 0, 1, 0], [], []>} : vector<16x16xf32>, vector<16x16xf32>, vector<16x16xf32> -> vector<16x16xf32>
    %68 = arith.addf %67, %46 : vector<16x16xf32>
    %cst_34 = arith.constant dense<0xFF800000> : vector<16xf32>
    %69 = vector.multi_reduction <maximumf>, %68, %cst_34 [1] : vector<16x16xf32> to vector<16xf32>
    %70 = vector.shape_cast %69 : vector<16xf32> to vector<16x1xf32>
    %71 = vector.broadcast %70 : vector<16x1xf32> to vector<16x16xf32>
    %72 = arith.subf %68, %71 : vector<16x16xf32>
    %73 = math.exp %72 : vector<16x16xf32>
    %cst_35 = arith.constant dense<0.000000e+00> : vector<16xf32>
    %74 = vector.multi_reduction <add>, %73, %cst_35 [1] : vector<16x16xf32> to vector<16xf32>
    %75 = vector.shape_cast %74 : vector<16xf32> to vector<16x1xf32>
    %76 = tpu.reciprocal %75 {approx = true} : vector<16x1xf32> -> vector<16x1xf32>
    %77 = vector.broadcast %76 : vector<16x1xf32> to vector<16x16xf32>
    %78 = arith.mulf %73, %77 : vector<16x16xf32>
    %cst_36 = arith.constant dense<0.000000e+00> : vector<16x16xf32>
    %79 = tpu.matmul %78, %66, %cst_36 {dimension_numbers = #tpu.dot_dimension_numbers<[1], [0], [0], [1], [0, 0, 1, 1], [], []>} : vector<16x16xf32>, vector<16x16xf32>, vector<16x16xf32> -> vector<16x16xf32>
    %c0_37 = arith.constant 0 : index
    %c16 = arith.constant 16 : index
    %80 = vector.load %arg8[%c0_37, %c16] : memref<16x32xf32, #tpu.memory_space<vmem>>, vector<16x16xf32>
    tpu.vector_store %arg8[%c0_37, %c16], %79 {strides = array<i32>} : memref<16x32xf32, #tpu.memory_space<vmem>>, vector<16x16xf32>,
    %c0_38 = arith.constant 0 : index
    %c0_39 = arith.constant 0 : index
    %81 = vector.load %arg8[%c0_38, %c0_39] : memref<16x32xf32, #tpu.memory_space<vmem>>, vector<16x32xf32>
    %cst_40 = arith.constant dense<0.000000e+00> : vector<16x32xf32>
    %82 = tpu.matmul %81, %13, %cst_40 {dimension_numbers = #tpu.dot_dimension_numbers<[1], [0], [0], [1], [0, 0, 1, 1], [], []>} : vector<16x32xf32>, vector<32x32xf32>, vector<16x32xf32> -> vector<16x32xf32>
    %83 = vector.broadcast %9 : vector<1x32xf32> to vector<16x32xf32>
    %84 = arith.addf %82, %83 : vector<16x32xf32>
    %85 = arith.addf %39, %84 : vector<16x32xf32>
    %cst_41 = arith.constant dense<0.000000e+00> : vector<16xf32>
    %86 = vector.multi_reduction <add>, %85, %cst_41 [1] : vector<16x32xf32> to vector<16xf32>
    %87 = vector.shape_cast %86 : vector<16xf32> to vector<16x1xf32>
    %cst_42 = arith.constant 3.200000e+01 : f32
    %88 = vector.broadcast %cst_42 : f32 to vector<16x1xf32>
    %89 = arith.divf %87, %88 : vector<16x1xf32>
    %90 = vector.broadcast %89 : vector<16x1xf32> to vector<16x32xf32>
    %91 = arith.subf %85, %90 : vector<16x32xf32>
    %92 = arith.mulf %91, %91 : vector<16x32xf32>
    %cst_43 = arith.constant dense<0.000000e+00> : vector<16xf32>
    %93 = vector.multi_reduction <add>, %92, %cst_43 [1] : vector<16x32xf32> to vector<16xf32>
    %94 = vector.shape_cast %93 : vector<16xf32> to vector<16x1xf32>
    %cst_44 = arith.constant 3.200000e+01 : f32
    %95 = vector.broadcast %cst_44 : f32 to vector<16x1xf32>
    %96 = arith.divf %94, %95 : vector<16x1xf32>
    %97 = vector.broadcast %89 : vector<16x1xf32> to vector<16x32xf32>
    %98 = arith.subf %85, %97 : vector<16x32xf32>
    %cst_45 = arith.constant 9.99999996E-13 : f32
    %99 = vector.broadcast %cst_45 : f32 to vector<16x1xf32>
    %100 = arith.addf %96, %99 : vector<16x1xf32>
    %101 = math.rsqrt %100 : vector<16x1xf32>
    %102 = vector.broadcast %101 : vector<16x1xf32> to vector<16x32xf32>
    %103 = arith.mulf %98, %102 : vector<16x32xf32>
    %104 = vector.broadcast %5 : vector<1x32xf32> to vector<16x32xf32>
    %105 = arith.mulf %103, %104 : vector<16x32xf32>
    %106 = vector.broadcast %6 : vector<1x32xf32> to vector<16x32xf32>
    %107 = arith.addf %105, %106 : vector<16x32xf32>
    %cst_46 = arith.constant dense<0.000000e+00> : vector<16x64xf32>
    %108 = tpu.matmul %107, %14, %cst_46 {dimension_numbers = #tpu.dot_dimension_numbers<[1], [0], [0], [1], [0, 0, 1, 1], [], []>} : vector<16x32xf32>, vector<32x64xf32>, vector<16x64xf32> -> vector<16x64xf32>
    %109 = vector.broadcast %1 : vector<1x64xf32> to vector<16x64xf32>
    %110 = arith.addf %108, %109 : vector<16x64xf32>
    %cst_47 = arith.constant 5.000000e-01 : f32
    %111 = vector.broadcast %cst_47 : f32 to vector<16x64xf32>
    %112 = arith.mulf %111, %110 : vector<16x64xf32>
    %cst_48 = arith.constant 4.471500e-02 : f32
    %113 = vector.broadcast %cst_48 : f32 to vector<16x64xf32>
    %114 = arith.mulf %113, %110 : vector<16x64xf32>
    %115 = arith.mulf %114, %110 : vector<16x64xf32>
    %116 = arith.mulf %115, %110 : vector<16x64xf32>
    %117 = arith.addf %110, %116 : vector<16x64xf32>
    %cst_49 = arith.constant 0.797884583 : f32
    %118 = vector.broadcast %cst_49 : f32 to vector<16x64xf32>
    %119 = arith.mulf %118, %117 : vector<16x64xf32>
    %120 = math.tanh %119 : vector<16x64xf32>
    %cst_50 = arith.constant 1.000000e+00 : f32
    %121 = vector.broadcast %cst_50 : f32 to vector<16x64xf32>
    %122 = arith.addf %121, %120 : vector<16x64xf32>
    %123 = arith.mulf %112, %122 : vector<16x64xf32>
    %c0_51 = arith.constant 0 : index
    %c0_52 = arith.constant 0 : index
    %124 = vector.load %arg5[%c0_51, %c0_52] : memref<64x32xf32, #tpu.memory_space<vmem>>, vector<64x32xf32>
    %cst_53 = arith.constant dense<0.000000e+00> : vector<16x32xf32>
    %125 = tpu.matmul %123, %124, %cst_53 {dimension_numbers = #tpu.dot_dimension_numbers<[1], [0], [0], [1], [0, 0, 1, 1], [], []>} : vector<16x64xf32>, vector<64x32xf32>, vector<16x32xf32> -> vector<16x32xf32>
    %126 = vector.broadcast %10 : vector<1x32xf32> to vector<16x32xf32>
    %127 = arith.addf %125, %126 : vector<16x32xf32>
    %128 = arith.addf %107, %127 : vector<16x32xf32>
    %cst_54 = arith.constant dense<0.000000e+00> : vector<16xf32>
    %129 = vector.multi_reduction <add>, %128, %cst_54 [1] : vector<16x32xf32> to vector<16xf32>
    %130 = vector.shape_cast %129 : vector<16xf32> to vector<16x1xf32>
    %cst_55 = arith.constant 3.200000e+01 : f32
    %131 = vector.broadcast %cst_55 : f32 to vector<16x1xf32>
    %132 = arith.divf %130, %131 : vector<16x1xf32>
    %133 = vector.broadcast %132 : vector<16x1xf32> to vector<16x32xf32>
    %134 = arith.subf %128, %133 : vector<16x32xf32>
    %135 = arith.mulf %134, %134 : vector<16x32xf32>
    %cst_56 = arith.constant dense<0.000000e+00> : vector<16xf32>
    %136 = vector.multi_reduction <add>, %135, %cst_56 [1] : vector<16x32xf32> to vector<16xf32>
    %137 = vector.shape_cast %136 : vector<16xf32> to vector<16x1xf32>
    %cst_57 = arith.constant 3.200000e+01 : f32
    %138 = vector.broadcast %cst_57 : f32 to vector<16x1xf32>
    %139 = arith.divf %137, %138 : vector<16x1xf32>
    %140 = vector.broadcast %132 : vector<16x1xf32> to vector<16x32xf32>
    %141 = arith.subf %128, %140 : vector<16x32xf32>
    %cst_58 = arith.constant 9.99999996E-13 : f32
    %142 = vector.broadcast %cst_58 : f32 to vector<16x1xf32>
    %143 = arith.addf %139, %142 : vector<16x1xf32>
    %144 = math.rsqrt %143 : vector<16x1xf32>
    %145 = vector.broadcast %144 : vector<16x1xf32> to vector<16x32xf32>
    %146 = arith.mulf %141, %145 : vector<16x32xf32>
    %147 = vector.broadcast %7 : vector<1x32xf32> to vector<16x32xf32>
    %148 = arith.mulf %146, %147 : vector<16x32xf32>
    %149 = vector.broadcast %8 : vector<1x32xf32> to vector<16x32xf32>
    %150 = arith.addf %148, %149 : vector<16x32xf32>
    %151 = tpu.iota {dimensions = array<i32: 0>} : vector<2x16xi32>
    %152 = tpu.iota {dimensions = array<i32: 1>} : vector<2x16xi32>
    %c8_i32 = arith.constant 8 : i32
    %153 = vector.broadcast %c8_i32 : i32 to vector<2x16xi32>
    %154 = arith.muli %151, %153 : vector<2x16xi32>
    %155 = arith.cmpi eq, %152, %154 : vector<2x16xi32>
    %156 = arith.extui %155 : vector<2x16xi1> to vector<2x16xi32>
    %157 = arith.sitofp %156 : vector<2x16xi32> to vector<2x16xf32>
    %cst_59 = arith.constant dense<0.000000e+00> : vector<2x32xf32>
    %158 = tpu.matmul %157, %150, %cst_59 {dimension_numbers = #tpu.dot_dimension_numbers<[1], [0], [0], [1], [0, 0, 1, 1], [], []>} : vector<2x16xf32>, vector<16x32xf32>, vector<2x32xf32> -> vector<2x32xf32>
    %cst_60 = arith.constant dense<0.000000e+00> : vector<2x32xf32>
    %159 = tpu.matmul %158, %15, %cst_60 {dimension_numbers = #tpu.dot_dimension_numbers<[1], [0], [0], [1], [0, 0, 1, 1], [], []>} : vector<2x32xf32>, vector<32x32xf32>, vector<2x32xf32> -> vector<2x32xf32>
    %160 = vector.broadcast %11 : vector<1x32xf32> to vector<2x32xf32>
    %161 = arith.addf %159, %160 : vector<2x32xf32>
    %162 = math.tanh %161 : vector<2x32xf32>
    %c0_61 = arith.constant 0 : index
    %c0_62 = arith.constant 0 : index
    %163 = vector.load %arg3[%c0_61, %c0_62] : memref<2x32xf32, #tpu.memory_space<vmem>>, vector<2x32xf32>
    %164 = arith.mulf %162, %163 : vector<2x32xf32>
    %cst_63 = arith.constant dense<0.000000e+00> : vector<2x128xf32>
    %165 = tpu.matmul %164, %16, %cst_63 {dimension_numbers = #tpu.dot_dimension_numbers<[1], [0], [0], [1], [0, 0, 1, 1], [], []>} : vector<2x32xf32>, vector<32x128xf32>, vector<2x128xf32> -> vector<2x128xf32>
    %166 = vector.broadcast %2 : vector<1x128xf32> to vector<2x128xf32>
    %167 = arith.addf %165, %166 : vector<2x128xf32>
    %c0_64 = arith.constant 0 : index
    %c0_65 = arith.constant 0 : index
    %168 = vector.load %arg7[%c0_64, %c0_65] : memref<2x128xf32, #tpu.memory_space<vmem>>, vector<2x128xf32>
    tpu.vector_store %arg7[%c0_64, %c0_65], %167 {strides = array<i32>} : memref<2x128xf32, #tpu.memory_space<vmem>>, vector<2x128xf32>,
    return
  }
  func.func @transform_0(%arg0: i32) -> (i32, i32) {
    %c0_i32 = arith.constant 0 : i32
    %c0_i32_0 = arith.constant 0 : i32
    %c0_i32_1 = arith.constant 0 : i32
    return %c0_i32, %c0_i32_0 : i32, i32
  }
  func.func @transform_1(%arg0: i32) -> (i32, i32) {
    %c0_i32 = arith.constant 0 : i32
    %c0_i32_0 = arith.constant 0 : i32
    %c0_i32_1 = arith.constant 0 : i32
    return %c0_i32, %c0_i32_0 : i32, i32
  }
  func.func @transform_2(%arg0: i32) -> (i32, i32) {
    %c0_i32 = arith.constant 0 : i32
    %c0_i32_0 = arith.constant 0 : i32
    %c0_i32_1 = arith.constant 0 : i32
    return %c0_i32, %c0_i32_0 : i32, i32
  }
  func.func @transform_3(%arg0: i32) -> (i32, i32) {
    %c0_i32 = arith.constant 0 : i32
    %c0_i32_0 = arith.constant 0 : i32
    %c0_i32_1 = arith.constant 0 : i32
    return %c0_i32, %c0_i32_0 : i32, i32
  }
  func.func @transform_4(%arg0: i32) -> (i32, i32) {
    %c0_i32 = arith.constant 0 : i32
    %c0_i32_0 = arith.constant 0 : i32
    %c0_i32_1 = arith.constant 0 : i32
    return %c0_i32, %c0_i32_0 : i32, i32
  }
  func.func @transform_5(%arg0: i32) -> (i32, i32) {
    %c0_i32 = arith.constant 0 : i32
    %c0_i32_0 = arith.constant 0 : i32
    %c0_i32_1 = arith.constant 0 : i32
    return %c0_i32, %c0_i32_0 : i32, i32
  }
  func.func @transform_6(%arg0: i32) -> (i32, i32) {
    %c0_i32 = arith.constant 0 : i32
    %c0_i32_0 = arith.constant 0 : i32
    %c0_i32_1 = arith.constant 0 : i32
    return %c0_i32, %c0_i32_0 : i32, i32
  }
}

</mosaic_0001>

<llo_original>
// kernel: finetuned_bert_forward.1
$region0: #{finetuned_bert_forward.1}
  #allocation0 [shape = 'u32[]', space=smem, size = 0x4, offset = 0x4, fixed_abs, tag = 'smem constant byte address 0x4 - core index']
  #allocation1 [shape = 'u32[72,128]{1,0:T(1,128)}', space=vmem, size = 0x9000, scoped, tag = 'internal scratch']
  #allocation2 [shape = 'f32[16,32]{1,0:T(8,128)}', space=vmem, size = 0x2000, scoped, tag = 'scratch operand']
  %s0 = inlined_call_operand.vmem [shape: f32[16,32], index: 0, kind: input, shape index: {}]
  %s1 = inlined_call_operand.vmem [shape: f32[16,16], index: 1, kind: input, shape index: {}]
  %s2 = inlined_call_operand.vmem [shape: f32[2,32], index: 2, kind: input, shape index: {}]
  %s3 = inlined_call_operand.vmem [shape: f32[32,384], index: 3, kind: input, shape index: {}]
  %s4 = inlined_call_operand.vmem [shape: f32[64,32], index: 4, kind: input, shape index: {}]
  %s5 = inlined_call_operand.vmem [shape: f32[16,128], index: 5, kind: input, shape index: {}]
  %s6 = inlined_call_operand.hbm [shape: f32[2,128], index: 6, kind: output, shape index: {}]
  %s7 = sld [smem:[#allocation0]]
  $region34: #{finetuned_bert_forward.1} parent=0
    _
  %s9 = ssub.s32 1, %s7
  %s10 = scalar_select 0, %s9, %s7
  $region1: #{finetuned_bert_forward.1} parent=0
    #allocation3 [shape = 'u8[1024]{0}', space=vmem, size = 0x400, scoped, tag = 'output window, operand 0, single buffered']
    #allocation4 [shape = 's32[1]{0}', space=sflag, size = 0x4, scoped, tag = 'scoped memory for finetuned_bert_forward.1']
    %11 = vsyncpa [#allocation4], 0
    // Predicated region
    $region2: #{finetuned_bert_forward.1} parent=1 // pred_check
      _
    $region3: #{finetuned_bert_forward.1} parent=1 // pred_check_branch
      %13 = sbr.rel (0) target = $region5
    $region4: #{finetuned_bert_forward.1} parent=1 // pred_region
      _
    $region5: #{finetuned_bert_forward.1} parent=1 // pred_fallthru
      _
    // Predicated region
    $region6: #{finetuned_bert_forward.1} parent=1 // pred_check
      _
    $region7: #{finetuned_bert_forward.1} parent=1 // pred_check_branch
      %15 = sbr.rel (0) target = $region9
    $region8: #{finetuned_bert_forward.1} parent=1 // pred_region
      _
    $region9: #{finetuned_bert_forward.1} parent=1 // pred_fallthru
      _
    // Predicated region
    $region10: #{finetuned_bert_forward.1} parent=1 // pred_check
      _
    $region11: #{finetuned_bert_forward.1} parent=1 // pred_check_branch
      %17 = sbr.rel (0) target = $region13
    $region12: #{finetuned_bert_forward.1} parent=1 // pred_region
      _
    $region13: #{finetuned_bert_forward.1} parent=1 // pred_fallthru
      _
    // Predicated region
    $region14: #{finetuned_bert_forward.1} parent=1 // pred_check
      _
    $region15: #{finetuned_bert_forward.1} parent=1 // pred_check_branch
      %19 = sbr.rel (0) target = $region17
    $region16: #{finetuned_bert_forward.1} parent=1 // pred_region
      _
    $region17: #{finetuned_bert_forward.1} parent=1 // pred_fallthru
      _
    // Predicated region
    $region18: #{finetuned_bert_forward.1} parent=1 // pred_check
      _
    $region19: #{finetuned_bert_forward.1} parent=1 // pred_check_branch
      %21 = sbr.rel (0) target = $region21
    $region20: #{finetuned_bert_forward.1} parent=1 // pred_region
      _
    $region21: #{finetuned_bert_forward.1} parent=1 // pred_fallthru
      _
    // Predicated region
    $region22: #{finetuned_bert_forward.1} parent=1 // pred_check
      _
    $region23: #{finetuned_bert_forward.1} parent=1 // pred_check_branch
      %23 = sbr.rel (0) target = $region25
    $region24: #{finetuned_bert_forward.1} parent=1 // pred_region
      _
    $region25: #{finetuned_bert_forward.1} parent=1 // pred_fallthru
      _
    %v24 = vld [vmem:[%s5] sm:$0x1]
    %v25 = vld [vmem:[%s5 + $0x1] sm:$0x1]
    %v26 = vld [vmem:[%s5 + $0x2] sm:$0x1]
    %v27 = vld [vmem:[%s5 + $0x3] sm:$0x1]
    %v28 = vld [vmem:[%s5 + $0x4] sm:$0x1]
    %v29 = vld [vmem:[%s5 + $0x5] sm:$0x1]
    %v30 = vld [vmem:[%s5 + $0x6] sm:$0x1]
    %v31 = vld [vmem:[%s5 + $0x7] sm:$0x1]
    %v32 = vld [vmem:[%s5 + $0x8] sm:$0x1]
    %v33 = vld [vmem:[%s5 + $0x9] sm:$0x1]
    %v34 = vld [vmem:[%s5 + $0xa] sm:$0x1]
    %v35 = vld [vmem:[%s5 + $0xb] sm:$0x1]
    %v36 = vld [vmem:[%s3] sm:$0xff]
    %v37 = vld [vmem:[%s3 + $0x18] sm:$0xff]
    %v38 = vld [vmem:[%s3 + $0x30] sm:$0xff]
    %v39 = vld [vmem:[%s3 + $0x48] sm:$0xff]
    %v40 = vld [vmem:[%s3 + $0x8] sm:$0xff]
    %v41 = vld [vmem:[%s3 + $0x20] sm:$0xff]
    %v42 = vld [vmem:[%s3 + $0x38] sm:$0xff]
    %v43 = vld [vmem:[%s3 + $0x50] sm:$0xff]
    %v44 = vld [vmem:[%s3 + $0x8] sm:$0xff]
    %v45 = vld [vmem:[%s3 + $0x10] sm:$0xff]
    %v46 = vld [vmem:[%s3 + $0x20] sm:$0xff]
    %v47 = vld [vmem:[%s3 + $0x28] sm:$0xff]
    %v48 = vld [vmem:[%s3 + $0x38] sm:$0xff]
    %v49 = vld [vmem:[%s3 + $0x40] sm:$0xff]
    %v50 = vld [vmem:[%s3 + $0x50] sm:$0xff]
    %v51 = vld [vmem:[%s3 + $0x58] sm:$0xff]
    %v52 = vld [vmem:[%s0] sm:$0xff]
    %v53 = vld [vmem:[%s0 + $0x8] sm:$0xff]
    %vm54 = vcmask 261120
    %v55 = vsel %vm54, %v52, 0.0
    %56 = vadd.xlane.f32.xlu0 %v55
    %v57 = vpop.xlane.xlu0 %56
    %v58 = vsel %vm54, %v53, 0.0
    %59 = vadd.xlane.f32.xlu0 %v58
    %v60 = vpop.xlane.xlu0 %59
    %v61 = vrcp.pop 32.0
    %v62 = vmul.f32 32.0, %v61
    %v63 = vsub.f32 1.0, %v62
    %v64 = vmul.f32 %v61, %v63
    %v65 = vadd.f32 %v61, %v64
    %vm66 = vweird.f32 %v61
    %v67 = vsel %vm66, %v61, %v65
    %v68 = vmul.f32 %v57, %v67
    %v69 = vmul.f32 %v60, %v67
    %v70 = vsub.f32 %v52, %v68
    %v71 = vsub.f32 %v53, %v69
    %v72 = vmul.f32 %v70, %v70
    %v73 = vmul.f32 %v71, %v71
    %v74 = vsel %vm54, %v72, 0.0
    %75 = vadd.xlane.f32.xlu0 %v74
    %v76 = vpop.xlane.xlu0 %75
    %v77 = vsel %vm54, %v73, 0.0
    %78 = vadd.xlane.f32.xlu0 %v77
    %v79 = vpop.xlane.xlu0 %78
    %v80 = vmul.f32 %v76, %v67
    %v81 = vmul.f32 %v79, %v67
    %v82 = vadd.f32 %v80, 1e-12
    %v83 = vadd.f32 %v81, 1e-12
    %v84 = vrsqrt.pop %v82
    %v85 = vmul.f32 %v84, %v82
    %v86 = vmul.f32 %v85, %v84
    %v87 = vmul.f32 0.5, %v86
    %v88 = vsub.f32 1.5, %v87
    %v89 = vmul.f32 %v84, %v88
    %vm90 = vweird.f32 %v82
    %vm91 = vweird.f32 %v84
    %vm92 = vmor %vm90, %vm91
    %v93 = vsel %vm92, %v84, %v89
    %v94 = vrsqrt.pop %v83
    %v95 = vmul.f32 %v94, %v83
    %v96 = vmul.f32 %v95, %v94
    %v97 = vmul.f32 0.5, %v96
    %v98 = vsub.f32 1.5, %v97
    %v99 = vmul.f32 %v94, %v98
    %vm100 = vweird.f32 %v83
    %vm101 = vweird.f32 %v94
    %vm102 = vmor %vm100, %vm101
    %v103 = vsel %vm102, %v94, %v99
    %v104 = vmul.f32 %v70, %v93
    %v105 = vmul.f32 %v71, %v103
    %v106 = vperm.slane %v27, 0
    %v107 = vmul.f32 %v104, %v106
    %v108 = vmul.f32 %v105, %v106
    %v109 = vperm.slane %v28, 0
    %v110 = vadd.f32 %v107, %v109
    %v111 = vadd.f32 %v108, %v109
    %v112 = vperm.slane %v24, 0
    %v114 = vsel %vm54, %v110, 0
    %v117 = vsel %vm54, %v111, 0
    %119 = vmatpush.msra.mxu0 0.0
    %120 = vmatpush.msra.mxu0 0.0
    %121 = vmatpush.msra.mxu0 0.0
    %122 = vmatpush.msra.mxu0 0.0
    %123 = vmatpush.msra.mxu0 0.0
    %124 = vmatpush.msra.mxu0 0.0
    %125 = vmatpush.msra.mxu0 0.0
    %126 = vmatpush.msra.mxu0 0.0
    %127 = vmatpush.msra.mxu0 0.0
    %128 = vmatpush.msra.mxu0 0.0
    %129 = vmatpush.msra.mxu0 0.0
    %130 = vmatpush.msra.mxu0 0.0
    %131 = vmatpush.msra.mxu0 %v39
    %132 = vmatpush.msra.mxu0 %v38
    %133 = vmatpush.msra.mxu0 %v37
    %134 = vmatpush.msra.mxu0 %v36
    %135 = vmatmul.f32.gmra.mxu0 %v114
    %v136 = vpop.f32.mrf.mxu0
    %v137 = vadd.f32 %v112, %v136
    %138 = vmatmul.f32.gmra.mxu0 %v117
    %v139 = vpop.f32.mrf.mxu0
    %v140 = vadd.f32 %v112, %v139
    %141 = vdwg.mxu0
    %v142 = vld [vmem:[%s1] sm:$0xff]
    %v143 = vld [vmem:[%s1 + $0x8] sm:$0xff]
    %146 = vrot.lane.b32.xlu0 %v137, 96
    %v147 = vpop.permute.xlu0 %146
    %148 = vrot.lane.b32.xlu0 %v140, 96
    %v149 = vpop.permute.xlu0 %148
    %vm150 = vcmask 130048
    %v151 = vsel %vm150, %v137, 0
    %v153 = vsel %vm150, %v140, 0
    %v155 = vsel %vm150, %v147, 0
    %v157 = vsel %vm150, %v149, 0
    %159 = vmatpush.xpose.msra.mxu0 0.0
    %160 = vmatpush.xpose.msra.mxu0 0.0
    %161 = vmatpush.xpose.msra.mxu0 0.0
    %162 = vmatpush.xpose.msra.mxu0 0.0
    %163 = vmatpush.xpose.msra.mxu0 0.0
    %164 = vmatpush.xpose.msra.mxu0 0.0
    %165 = vmatpush.xpose.msra.mxu0 0.0
    %166 = vmatpush.xpose.msra.mxu0 0.0
    %167 = vmatpush.xpose.msra.mxu0 0.0
    %168 = vmatpush.xpose.msra.mxu0 0.0
    %169 = vmatpush.xpose.msra.mxu0 0.0
    %170 = vmatpush.xpose.msra.mxu0 0.0
    %171 = vmatpush.xpose.msra.mxu0 0.0
    %172 = vmatpush.xpose.msra.mxu0 0.0
    %173 = vmatpush.xpose.msra.mxu0 %v157
    %174 = vmatpush.xpose.msra.mxu0 %v155
    %175 = vmatmul.f32.gmra.mxu0 %v151
    %v176 = vpop.f32.mrf.mxu0
    %v177 = vadd.f32 %v142, %v176
    %178 = vmatmul.f32.gmra.mxu0 %v153
    %v179 = vpop.f32.mrf.mxu0
    %v180 = vadd.f32 %v143, %v179
    %181 = vdwg.mxu0
    %v182 = vsel %vm150, %v177, -inf
    %183 = vmax.xlane.f32.xlu0 %v182
    %v184 = vpop.xlane.xlu0 %183
    %v185 = vsel %vm150, %v180, -inf
    %186 = vmax.xlane.f32.xlu0 %v185
    %v187 = vpop.xlane.xlu0 %186
    %v188 = vsub.f32 %v177, %v184
    %v189 = vsub.f32 %v180, %v187
    %v190 = vmul.f32 %v188, 1.442695
    %v191 = vpow.pop %v190
    %v192 = vmul.f32 %v189, 1.442695
    %v193 = vpow.pop %v192
    %v194 = vsel %vm150, %v191, 0.0
    %195 = vadd.xlane.f32.xlu0 %v194
    %v196 = vpop.xlane.xlu0 %195
    %v197 = vsel %vm150, %v193, 0.0
    %198 = vadd.xlane.f32.xlu0 %v197
    %v199 = vpop.xlane.xlu0 %198
    %v200 = vrcp.pop %v196
    %v201 = vrcp.pop %v199
    %v202 = vmul.f32 %v191, %v200
    %v203 = vmul.f32 %v193, %v201
    %204 = vrot.lane.b32.xlu0 %v137, 64
    %v205 = vpop.permute.xlu0 %204
    %206 = vrot.lane.b32.xlu0 %v140, 64
    %v207 = vpop.permute.xlu0 %206
    %v211 = vsel %vm150, %v202, 0
    %v214 = vsel %vm150, %v203, 0
    %216 = vmatpush.msra.mxu0 0.0
    %217 = vmatpush.msra.mxu0 0.0
    %218 = vmatpush.msra.mxu0 0.0
    %219 = vmatpush.msra.mxu0 0.0
    %220 = vmatpush.msra.mxu0 0.0
    %221 = vmatpush.msra.mxu0 0.0
    %222 = vmatpush.msra.mxu0 0.0
    %223 = vmatpush.msra.mxu0 0.0
    %224 = vmatpush.msra.mxu0 0.0
    %225 = vmatpush.msra.mxu0 0.0
    %226 = vmatpush.msra.mxu0 0.0
    %227 = vmatpush.msra.mxu0 0.0
    %228 = vmatpush.msra.mxu0 0.0
    %229 = vmatpush.msra.mxu0 0.0
    %230 = vmatpush.msra.mxu0 %v207
    %231 = vmatpush.msra.mxu0 %v205
    %232 = vmatmul.f32.gmra.mxu0 %v211
    %v233 = vpop.f32.mrf.mxu0
    %v234 = vadd.f32 0.0, %v233
    %235 = vmatmul.f32.gmra.mxu0 %v214
    %v236 = vpop.f32.mrf.mxu0
    %v237 = vadd.f32 0.0, %v236
    %238 = vdwg.mxu0
    %239 = vst.msk [vmem:[#allocation2] sm:$0xff] %vm150, %v234
    %240 = vst.msk [vmem:[#allocation2 + $0x8] sm:$0xff] %vm150, %v237
    %241 = vrot.lane.b32.xlu0 %v137, 112
    %v242 = vpop.permute.xlu0 %241
    %243 = vrot.lane.b32.xlu0 %v140, 112
    %v244 = vpop.permute.xlu0 %243
    %245 = vrot.lane.b32.xlu0 %v137, 80
    %v246 = vpop.permute.xlu0 %245
    %247 = vrot.lane.b32.xlu0 %v140, 80
    %v248 = vpop.permute.xlu0 %247
    %v249 = vsel %vm150, %v242, 0
    %v251 = vsel %vm150, %v244, 0
    %v253 = vsel %vm150, %v246, 0
    %v255 = vsel %vm150, %v248, 0
    %257 = vmatpush.xpose.msra.mxu0 0.0
    %258 = vmatpush.xpose.msra.mxu0 0.0
    %259 = vmatpush.xpose.msra.mxu0 0.0
    %260 = vmatpush.xpose.msra.mxu0 0.0
    %261 = vmatpush.xpose.msra.mxu0 0.0
    %262 = vmatpush.xpose.msra.mxu0 0.0
    %263 = vmatpush.xpose.msra.mxu0 0.0
    %264 = vmatpush.xpose.msra.mxu0 0.0
    %265 = vmatpush.xpose.msra.mxu0 0.0
    %266 = vmatpush.xpose.msra.mxu0 0.0
    %267 = vmatpush.xpose.msra.mxu0 0.0
    %268 = vmatpush.xpose.msra.mxu0 0.0
    %269 = vmatpush.xpose.msra.mxu0 0.0
    %270 = vmatpush.xpose.msra.mxu0 0.0
    %271 = vmatpush.xpose.msra.mxu0 %v255
    %272 = vmatpush.xpose.msra.mxu0 %v253
    %273 = vmatmul.f32.gmra.mxu0 %v249
    %v274 = vpop.f32.mrf.mxu0
    %v275 = vadd.f32 %v142, %v274
    %276 = vmatmul.f32.gmra.mxu0 %v251
    %v277 = vpop.f32.mrf.mxu0
    %v278 = vadd.f32 %v143, %v277
    %279 = vdwg.mxu0
    %v280 = vsel %vm150, %v275, -inf
    %281 = vmax.xlane.f32.xlu0 %v280
    %v282 = vpop.xlane.xlu0 %281
    %v283 = vsel %vm150, %v278, -inf
    %284 = vmax.xlane.f32.xlu0 %v283
    %v285 = vpop.xlane.xlu0 %284
    %v286 = vsub.f32 %v275, %v282
    %v287 = vsub.f32 %v278, %v285
    %v288 = vmul.f32 %v286, 1.442695
    %v289 = vpow.pop %v288
    %v290 = vmul.f32 %v287, 1.442695
    %v291 = vpow.pop %v290
    %v292 = vsel %vm150, %v289, 0.0
    %293 = vadd.xlane.f32.xlu0 %v292
    %v294 = vpop.xlane.xlu0 %293
    %v295 = vsel %vm150, %v291, 0.0
    %296 = vadd.xlane.f32.xlu0 %v295
    %v297 = vpop.xlane.xlu0 %296
    %v298 = vrcp.pop %v294
    %v299 = vrcp.pop %v297
    %v300 = vmul.f32 %v289, %v298
    %v301 = vmul.f32 %v291, %v299
    %302 = vrot.lane.b32.xlu0 %v137, 48
    %v303 = vpop.permute.xlu0 %302
    %304 = vrot.lane.b32.xlu0 %v140, 48
    %v305 = vpop.permute.xlu0 %304
    %v309 = vsel %vm150, %v300, 0
    %v312 = vsel %vm150, %v301, 0
    %314 = vmatpush.msra.mxu0 0.0
    %315 = vmatpush.msra.mxu0 0.0
    %316 = vmatpush.msra.mxu0 0.0
    %317 = vmatpush.msra.mxu0 0.0
    %318 = vmatpush.msra.mxu0 0.0
    %319 = vmatpush.msra.mxu0 0.0
    %320 = vmatpush.msra.mxu0 0.0
    %321 = vmatpush.msra.mxu0 0.0
    %322 = vmatpush.msra.mxu0 0.0
    %323 = vmatpush.msra.mxu0 0.0
    %324 = vmatpush.msra.mxu0 0.0
    %325 = vmatpush.msra.mxu0 0.0
    %326 = vmatpush.msra.mxu0 0.0
    %327 = vmatpush.msra.mxu0 0.0
    %328 = vmatpush.msra.mxu0 %v305
    %329 = vmatpush.msra.mxu0 %v303
    %330 = vmatmul.f32.gmra.mxu0 %v309
    %v331 = vpop.f32.mrf.mxu0
    %v332 = vadd.f32 0.0, %v331
    %333 = vmatmul.f32.gmra.mxu0 %v312
    %v334 = vpop.f32.mrf.mxu0
    %v335 = vadd.f32 0.0, %v334
    %336 = vdwg.mxu0
    %339 = vrot.lane.b32.xlu0 %v332, 16
    %v340 = vpop.permute.xlu0 %339
    %341 = vrot.lane.b32.xlu0 %v335, 16
    %v342 = vpop.permute.xlu0 %341
    %vm345 = vcmask 261248
    %346 = vst.msk [vmem:[#allocation2] sm:$0xff] %vm345, %v340
    %347 = vst.msk [vmem:[#allocation2 + $0x8] sm:$0xff] %vm345, %v342
    %v348 = vld [vmem:[#allocation2] sm:$0xff]
    %v349 = vld [vmem:[#allocation2 + $0x8] sm:$0xff]
    %v350 = vperm.slane %v33, 0
    %355 = vrot.lane.b32.xlu0 %v36, 32
    %v356 = vpop.permute.xlu0 %355
    %357 = vrot.lane.b32.xlu0 %v37, 32
    %v358 = vpop.permute.xlu0 %357
    %359 = vrot.lane.b32.xlu0 %v38, 32
    %v360 = vpop.permute.xlu0 %359
    %361 = vrot.lane.b32.xlu0 %v39, 32
    %v362 = vpop.permute.xlu0 %361
    %v368 = vsel %vm54, %v348, 0
    %v371 = vsel %vm54, %v349, 0
    %373 = vmatpush.msra.mxu0 0.0
    %374 = vmatpush.msra.mxu0 0.0
    %375 = vmatpush.msra.mxu0 0.0
    %376 = vmatpush.msra.mxu0 0.0
    %377 = vmatpush.msra.mxu0 0.0
    %378 = vmatpush.msra.mxu0 0.0
    %379 = vmatpush.msra.mxu0 0.0
    %380 = vmatpush.msra.mxu0 0.0
    %381 = vmatpush.msra.mxu0 0.0
    %382 = vmatpush.msra.mxu0 0.0
    %383 = vmatpush.msra.mxu0 0.0
    %384 = vmatpush.msra.mxu0 0.0
    %385 = vmatpush.msra.mxu0 %v362
    %386 = vmatpush.msra.mxu0 %v360
    %387 = vmatpush.msra.mxu0 %v358
    %388 = vmatpush.msra.mxu0 %v356
    %389 = vmatmul.f32.gmra.mxu0 %v368
    %v390 = vpop.f32.mrf.mxu0
    %v391 = vadd.f32 %v350, %v390
    %392 = vmatmul.f32.gmra.mxu0 %v371
    %v393 = vpop.f32.mrf.mxu0
    %v394 = vadd.f32 %v350, %v393
    %395 = vdwg.mxu0
    %v396 = vadd.f32 %v110, %v391
    %v397 = vadd.f32 %v111, %v394
    %v398 = vsel %vm54, %v396, 0.0
    %399 = vadd.xlane.f32.xlu0 %v398
    %v400 = vpop.xlane.xlu0 %399
    %v401 = vsel %vm54, %v397, 0.0
    %402 = vadd.xlane.f32.xlu0 %v401
    %v403 = vpop.xlane.xlu0 %402
    %v404 = vmul.f32 %v400, %v67
    %v405 = vmul.f32 %v403, %v67
    %v406 = vsub.f32 %v396, %v404
    %v407 = vsub.f32 %v397, %v405
    %v408 = vmul.f32 %v406, %v406
    %v409 = vmul.f32 %v407, %v407
    %v410 = vsel %vm54, %v408, 0.0
    %411 = vadd.xlane.f32.xlu0 %v410
    %v412 = vpop.xlane.xlu0 %411
    %v413 = vsel %vm54, %v409, 0.0
    %414 = vadd.xlane.f32.xlu0 %v413
    %v415 = vpop.xlane.xlu0 %414
    %v416 = vmul.f32 %v412, %v67
    %v417 = vmul.f32 %v415, %v67
    %v418 = vadd.f32 %v416, 1e-12
    %v419 = vadd.f32 %v417, 1e-12
    %v420 = vrsqrt.pop %v418
    %v421 = vmul.f32 %v420, %v418
    %v422 = vmul.f32 %v421, %v420
    %v423 = vmul.f32 0.5, %v422
    %v424 = vsub.f32 1.5, %v423
    %v425 = vmul.f32 %v420, %v424
    %vm426 = vweird.f32 %v418
    %vm427 = vweird.f32 %v420
    %vm428 = vmor %vm426, %vm427
    %v429 = vsel %vm428, %v420, %v425
    %v430 = vrsqrt.pop %v419
    %v431 = vmul.f32 %v430, %v419
    %v432 = vmul.f32 %v431, %v430
    %v433 = vmul.f32 0.5, %v432
    %v434 = vsub.f32 1.5, %v433
    %v435 = vmul.f32 %v430, %v434
    %vm436 = vweird.f32 %v419
    %vm437 = vweird.f32 %v430
    %vm438 = vmor %vm436, %vm437
    %v439 = vsel %vm438, %v430, %v435
    %v440 = vmul.f32 %v406, %v429
    %v441 = vmul.f32 %v407, %v439
    %v442 = vperm.slane %v29, 0
    %v443 = vmul.f32 %v440, %v442
    %v444 = vmul.f32 %v441, %v442
    %v445 = vperm.slane %v30, 0
    %v446 = vadd.f32 %v443, %v445
    %v447 = vadd.f32 %v444, %v445
    %v448 = vperm.slane %v25, 0
    %v450 = vsel %vm54, %v446, 0
    %v453 = vsel %vm54, %v447, 0
    %455 = vmatpush.msra.mxu0 0.0
    %456 = vmatpush.msra.mxu0 0.0
    %457 = vmatpush.msra.mxu0 0.0
    %458 = vmatpush.msra.mxu0 0.0
    %459 = vmatpush.msra.mxu0 0.0
    %460 = vmatpush.msra.mxu0 0.0
    %461 = vmatpush.msra.mxu0 0.0
    %462 = vmatpush.msra.mxu0 0.0
    %463 = vmatpush.msra.mxu0 0.0
    %464 = vmatpush.msra.mxu0 0.0
    %465 = vmatpush.msra.mxu0 0.0
    %466 = vmatpush.msra.mxu0 0.0
    %467 = vmatpush.msra.mxu0 %v43
    %468 = vmatpush.msra.mxu0 %v42
    %469 = vmatpush.msra.mxu0 %v41
    %470 = vmatpush.msra.mxu0 %v40
    %471 = vmatmul.f32.gmra.mxu0 %v450
    %v472 = vpop.f32.mrf.mxu0
    %v473 = vadd.f32 %v448, %v472
    %474 = vmatmul.f32.gmra.mxu0 %v453
    %v475 = vpop.f32.mrf.mxu0
    %v476 = vadd.f32 %v448, %v475
    %477 = vdwg.mxu0
    %v478 = vmul.f32 %v473, 0.5
    %v479 = vmul.f32 %v476, 0.5
    %v480 = vmul.f32 %v473, 0.044715
    %v481 = vmul.f32 %v476, 0.044715
    %v482 = vmul.f32 %v480, %v473
    %v483 = vmul.f32 %v481, %v476
    %v484 = vmul.f32 %v482, %v473
    %v485 = vmul.f32 %v483, %v476
    %v486 = vadd.f32 %v473, %v484
    %v487 = vadd.f32 %v476, %v485
    %v488 = vmul.f32 %v486, 0.7978846
    %v489 = vmul.f32 %v487, 0.7978846
    %v490 = vtanh.pop %v488
    %v491 = vtanh.pop %v489
    %v492 = vadd.f32 %v490, 1.0
    %v493 = vadd.f32 %v491, 1.0
    %v494 = vmul.f32 %v478, %v492
    %v495 = vmul.f32 %v479, %v493
    %v496 = vld [vmem:[%s4] sm:$0xff]
    %v497 = vld [vmem:[%s4 + $0x8] sm:$0xff]
    %v498 = vld [vmem:[%s4 + $0x10] sm:$0xff]
    %v499 = vld [vmem:[%s4 + $0x18] sm:$0xff]
    %v500 = vld [vmem:[%s4 + $0x20] sm:$0xff]
    %v501 = vld [vmem:[%s4 + $0x28] sm:$0xff]
    %v502 = vld [vmem:[%s4 + $0x30] sm:$0xff]
    %v503 = vld [vmem:[%s4 + $0x38] sm:$0xff]
    %v504 = vperm.slane %v34, 0
    %vm505 = vcmask 523264
    %v507 = vsel %vm505, %v494, 0
    %v510 = vsel %vm505, %v495, 0
    %512 = vmatpush.msra.mxu0 0.0
    %513 = vmatpush.msra.mxu0 0.0
    %514 = vmatpush.msra.mxu0 0.0
    %515 = vmatpush.msra.mxu0 0.0
    %516 = vmatpush.msra.mxu0 0.0
    %517 = vmatpush.msra.mxu0 0.0
    %518 = vmatpush.msra.mxu0 0.0
    %519 = vmatpush.msra.mxu0 0.0
    %520 = vmatpush.msra.mxu0 %v503
    %521 = vmatpush.msra.mxu0 %v502
    %522 = vmatpush.msra.mxu0 %v501
    %523 = vmatpush.msra.mxu0 %v500
    %524 = vmatpush.msra.mxu0 %v499
    %525 = vmatpush.msra.mxu0 %v498
    %526 = vmatpush.msra.mxu0 %v497
    %527 = vmatpush.msra.mxu0 %v496
    %528 = vmatmul.f32.gmra.mxu0 %v507
    %v529 = vpop.f32.mrf.mxu0
    %v530 = vadd.f32 %v504, %v529
    %531 = vmatmul.f32.gmra.mxu0 %v510
    %v532 = vpop.f32.mrf.mxu0
    %v533 = vadd.f32 %v504, %v532
    %534 = vdwg.mxu0
    %v535 = vadd.f32 %v446, %v530
    %v536 = vadd.f32 %v447, %v533
    %v537 = vsel %vm54, %v535, 0.0
    %538 = vadd.xlane.f32.xlu0 %v537
    %v539 = vpop.xlane.xlu0 %538
    %v540 = vsel %vm54, %v536, 0.0
    %541 = vadd.xlane.f32.xlu0 %v540
    %v542 = vpop.xlane.xlu0 %541
    %v543 = vmul.f32 %v539, %v67
    %v544 = vmul.f32 %v542, %v67
    %v545 = vsub.f32 %v535, %v543
    %v546 = vsub.f32 %v536, %v544
    %v547 = vmul.f32 %v545, %v545
    %v548 = vmul.f32 %v546, %v546
    %v549 = vsel %vm54, %v547, 0.0
    %550 = vadd.xlane.f32.xlu0 %v549
    %v551 = vpop.xlane.xlu0 %550
    %v552 = vsel %vm54, %v548, 0.0
    %553 = vadd.xlane.f32.xlu0 %v552
    %v554 = vpop.xlane.xlu0 %553
    %v555 = vmul.f32 %v551, %v67
    %v556 = vmul.f32 %v554, %v67
    %v557 = vadd.f32 %v555, 1e-12
    %v558 = vadd.f32 %v556, 1e-12
    %v559 = vrsqrt.pop %v557
    %v560 = vmul.f32 %v559, %v557
    %v561 = vmul.f32 %v560, %v559
    %v562 = vmul.f32 0.5, %v561
    %v563 = vsub.f32 1.5, %v562
    %v564 = vmul.f32 %v559, %v563
    %vm565 = vweird.f32 %v557
    %vm566 = vweird.f32 %v559
    %vm567 = vmor %vm565, %vm566
    %v568 = vsel %vm567, %v559, %v564
    %v569 = vrsqrt.pop %v558
    %v570 = vmul.f32 %v569, %v558
    %v571 = vmul.f32 %v570, %v569
    %v572 = vmul.f32 0.5, %v571
    %v573 = vsub.f32 1.5, %v572
    %v574 = vmul.f32 %v569, %v573
    %vm575 = vweird.f32 %v558
    %vm576 = vweird.f32 %v569
    %vm577 = vmor %vm575, %vm576
    %v578 = vsel %vm577, %v569, %v574
    %v579 = vmul.f32 %v545, %v568
    %v580 = vmul.f32 %v546, %v578
    %v581 = vperm.slane %v31, 0
    %v582 = vmul.f32 %v579, %v581
    %v583 = vmul.f32 %v580, %v581
    %v584 = vperm.slane %v32, 0
    %v585 = vadd.f32 %v582, %v584
    %v586 = vadd.f32 %v583, %v584
    %v587 = vlaneseq
    %v588 = vshrl.u32 %v587, 7
    %v589 = vlaneseq
    %v590 = vand.u32 %v589, 127
    %v591 = vmul.u32 %v588, 8
    %vm592 = vcmp.eq.s32.totalorder %v590, %v591
    %v593 = vsel %vm592, 1, 0
    %v594 = vcvt.s32.f32 %v593
    %v596 = vsel %vm150, %v594, 0
    %598 = vmatpush.msra.mxu0 0.0
    %599 = vmatpush.msra.mxu0 0.0
    %600 = vmatpush.msra.mxu0 0.0
    %601 = vmatpush.msra.mxu0 0.0
    %602 = vmatpush.msra.mxu0 0.0
    %603 = vmatpush.msra.mxu0 0.0
    %604 = vmatpush.msra.mxu0 0.0
    %605 = vmatpush.msra.mxu0 0.0
    %606 = vmatpush.msra.mxu0 0.0
    %607 = vmatpush.msra.mxu0 0.0
    %608 = vmatpush.msra.mxu0 0.0
    %609 = vmatpush.msra.mxu0 0.0
    %610 = vmatpush.msra.mxu0 0.0
    %611 = vmatpush.msra.mxu0 0.0
    %612 = vmatpush.msra.mxu0 %v586
    %613 = vmatpush.msra.mxu0 %v585
    %614 = vmatmul.f32.gmra.mxu0 %v596
    %v615 = vpop.f32.mrf.mxu0
    %v616 = vadd.f32 0.0, %v615
    %617 = vdwg.mxu0
    %v618 = vperm.slane %v35, 0
    %623 = vrot.lane.b32.xlu0 %v40, 64
    %v624 = vpop.permute.xlu0 %623
    %625 = vrot.lane.b32.xlu0 %v41, 64
    %v626 = vpop.permute.xlu0 %625
    %627 = vrot.lane.b32.xlu0 %v42, 64
    %v628 = vpop.permute.xlu0 %627
    %629 = vrot.lane.b32.xlu0 %v43, 64
    %v630 = vpop.permute.xlu0 %629
    %v636 = vsel %vm54, %v616, 0
    %638 = vmatpush.msra.mxu0 0.0
    %639 = vmatpush.msra.mxu0 0.0
    %640 = vmatpush.msra.mxu0 0.0
    %641 = vmatpush.msra.mxu0 0.0
    %642 = vmatpush.msra.mxu0 0.0
    %643 = vmatpush.msra.mxu0 0.0
    %644 = vmatpush.msra.mxu0 0.0
    %645 = vmatpush.msra.mxu0 0.0
    %646 = vmatpush.msra.mxu0 0.0
    %647 = vmatpush.msra.mxu0 0.0
    %648 = vmatpush.msra.mxu0 0.0
    %649 = vmatpush.msra.mxu0 0.0
    %650 = vmatpush.msra.mxu0 %v630
    %651 = vmatpush.msra.mxu0 %v628
    %652 = vmatpush.msra.mxu0 %v626
    %653 = vmatpush.msra.mxu0 %v624
    %654 = vmatmul.f32.gmra.mxu0 %v636
    %v655 = vpop.f32.mrf.mxu0
    %v656 = vadd.f32 %v618, %v655
    %657 = vdwg.mxu0
    %v658 = vtanh.pop %v656
    %v659 = vld [vmem:[%s2] sm:$0x3]
    %v660 = vmul.f32 %v658, %v659
    %v661 = vperm.slane %v26, 0
    %670 = vrot.lane.b32.xlu0 %v44, 32
    %v671 = vpop.permute.xlu0 %670
    %672 = vrot.lane.b32.xlu0 %v45, 32
    %v673 = vpop.permute.xlu0 %672
    %674 = vrot.lane.b32.xlu0 %v46, 32
    %v675 = vpop.permute.xlu0 %674
    %676 = vrot.lane.b32.xlu0 %v47, 32
    %v677 = vpop.permute.xlu0 %676
    %678 = vrot.lane.b32.xlu0 %v48, 32
    %v679 = vpop.permute.xlu0 %678
    %680 = vrot.lane.b32.xlu0 %v49, 32
    %v681 = vpop.permute.xlu0 %680
    %682 = vrot.lane.b32.xlu0 %v50, 32
    %v683 = vpop.permute.xlu0 %682
    %684 = vrot.lane.b32.xlu0 %v51, 32
    %v685 = vpop.permute.xlu0 %684
    %v686 = vsel %vm54, %v671, %v673
    %v687 = vsel %vm54, %v675, %v677
    %v688 = vsel %vm54, %v679, %v681
    %v689 = vsel %vm54, %v683, %v685
    %v695 = vsel %vm54, %v660, 0
    %697 = vmatpush.msra.mxu0 0.0
    %698 = vmatpush.msra.mxu0 0.0
    %699 = vmatpush.msra.mxu0 0.0
    %700 = vmatpush.msra.mxu0 0.0
    %701 = vmatpush.msra.mxu0 0.0
    %702 = vmatpush.msra.mxu0 0.0
    %703 = vmatpush.msra.mxu0 0.0
    %704 = vmatpush.msra.mxu0 0.0
    %705 = vmatpush.msra.mxu0 0.0
    %706 = vmatpush.msra.mxu0 0.0
    %707 = vmatpush.msra.mxu0 0.0
    %708 = vmatpush.msra.mxu0 0.0
    %709 = vmatpush.msra.mxu0 %v689
    %710 = vmatpush.msra.mxu0 %v688
    %711 = vmatpush.msra.mxu0 %v687
    %712 = vmatpush.msra.mxu0 %v686
    %713 = vmatmul.f32.gmra.mxu0 %v695
    %v714 = vpop.f32.mrf.mxu0
    %v715 = vadd.f32 %v661, %v714
    %716 = vdwg.mxu0
    %717 = vst [vmem:[#allocation3] sm:$0x3] %v715
    // Predicated region
    $region26: #{finetuned_bert_forward.1} parent=1 // pred_check
      _
    $region27: #{finetuned_bert_forward.1} parent=1 // pred_check_branch
      %719 = sbr.rel (0) target = $region29
    $region28: #{finetuned_bert_forward.1} parent=1 // pred_region
      %721 = vsyncadd [#allocation4], 0
      %s723 = sshll.u32 [#allocation3], 4
      %s724 = int_to_ptr.vmem [resolvable:$true] %s723
      %s725 = sshll.u32 %s6, 4
      %s726 = int_to_ptr.hbm [resolvable:$true] %s725
      %728 = dma.vmem_to_hbm [thread:$0]  %s724, 32, %s726, [#allocation4]
    $region29: #{finetuned_bert_forward.1} parent=1 // pred_fallthru
      _
    // Predicated region
    $region30: #{finetuned_bert_forward.1} parent=1 // pred_check
      _
    $region31: #{finetuned_bert_forward.1} parent=1 // pred_check_branch
      %730 = sbr.rel (0) target = $region33
    $region32: #{finetuned_bert_forward.1} parent=1 // pred_region
      %732 = dma.done [#allocation4], 32
    $region33: #{finetuned_bert_forward.1} parent=1 // pred_fallthru
      _
    %733 = vsyncpa [#allocation4], 1

</llo_original>
